<compile_context>
chip_gen: v7x
topology: tpu7x:2x2x1
jax: 0.10.0
libtpu: 0.0.40
codegen_flags: <defaults>
</compile_context>

<pallas_src>
import jax
import jax.numpy as jnp
from jax.experimental import pallas as pl
from jax.experimental.pallas import tpu as pltpu

BN_EPS = 1e-5
_FUSED_VMEM_BUDGET = 36 << 20   # bytes of x + y-scratch + out allowed fully resident
_FUSED_VMEM_LIMIT = 48 << 20    # scoped VMEM limit for fused call (safe on v7x's 64 MiB)
_FUSED_MAX_BATCH = 64           # cap on static unroll of the per-batch MXU loop
_SPATIAL_TILE_CAP = 16384       # lane-dense tile cap for the streaming path


# ---------------------------------------------------------------------------
# Fused path: whole activation resident in VMEM, single kernel invocation.
# ---------------------------------------------------------------------------
def fused_kernel(x_ref, w_ref, gamma_ref, beta_ref, o_ref, y_ref):
    # x_ref:     (N, Cin, HW)   full activation in VMEM
    # w_ref:     (Cout, Cin)    1x1 conv weight (squeezed)
    # gamma_ref, beta_ref: (Cout, 1)
    # o_ref:     (N, Cout, HW)  lane-dense output
    # y_ref:     (N, Cout, HW)  f32 scratch holding y = W x (no recompute)
    n, cout, hw = o_ref.shape
    w = w_ref[...]
    s = jnp.zeros((cout, 1), jnp.float32)
    sq = jnp.zeros((cout, 1), jnp.float32)
    for b in range(n):                                   # static unroll (n is small here)
        y = jnp.dot(w, x_ref[b].astype(jnp.float32),
                    preferred_element_type=jnp.float32)  # MXU, not VALU
        y_ref[b] = y
        s = s + jnp.sum(y, axis=1, keepdims=True)
        sq = sq + jnp.sum(y * y, axis=1, keepdims=True)

    inv_m = 1.0 / float(n * hw)
    mean = s * inv_m
    var = jnp.maximum(sq * inv_m - mean * mean, 0.0)     # guard cancellation (f32 accum)
    scale = gamma_ref[...] * jax.lax.rsqrt(var + BN_EPS)
    shift = beta_ref[...] - mean * scale
    for b in range(n):
        o_ref[b] = (y_ref[b] * scale + shift).astype(o_ref.dtype)


def _fused_forward(x3d, w2d, gamma2d, beta2d, out_dtype):
    n, cin, hw = x3d.shape
    cout = w2d.shape[0]
    return pl.pallas_call(
        fused_kernel,
        out_shape=jax.ShapeDtypeStruct((n, cout, hw), out_dtype),
        scratch_shapes=[pltpu.VMEM((n, cout, hw), jnp.float32)],
        compiler_params=pltpu.CompilerParams(vmem_limit_bytes=_FUSED_VMEM_LIMIT),
    )(x3d, w2d, gamma2d, beta2d)


# ---------------------------------------------------------------------------
# Streaming path: two passes over x (BN training stats need the full-batch
# mean/var before any element can be normalized).
# ---------------------------------------------------------------------------
def stats_kernel(x_ref, w_ref, sum_ref, sq_ref):
    # x_ref:   (1, Cin, TS)   tile of x (batch b, spatial tile s)
    # w_ref:   (Cout, Cin)
    # sum_ref, sq_ref: (1, Cout, 1) per-batch partial accumulators (resident
    #                  across the spatial grid axis of a given batch)
    @pl.when(pl.program_id(1) == 0)
    def _():
        sum_ref[...] = jnp.zeros_like(sum_ref)
        sq_ref[...] = jnp.zeros_like(sq_ref)

    y = jnp.dot(w_ref[...], x_ref[0].astype(jnp.float32),
                preferred_element_type=jnp.float32)      # (Cout, TS) on the MXU
    sum_ref[0] += jnp.sum(y, axis=1, keepdims=True)
    sq_ref[0] += jnp.sum(y * y, axis=1, keepdims=True)


def norm_kernel(x_ref, ws_ref, shift_ref, o_ref):
    # ws_ref:    (Cout, Cin)  conv weight pre-scaled by gamma * rsqrt(var+eps)
    # shift_ref: (Cout, 1)    beta - mean * scale
    # o_ref:     (1, Cout, TS) lane-dense output tile
    y = jnp.dot(ws_ref[...], x_ref[0].astype(jnp.float32),
                preferred_element_type=jnp.float32)
    o_ref[0] = (y + shift_ref[...]).astype(o_ref.dtype)


def _pick_spatial_tile(hw, cap=_SPATIAL_TILE_CAP):
    """Largest 128-multiple divisor of hw up to `cap`; else the full extent
    (a block dim equal to the array dim is always allowed)."""
    best = None
    for ts in range(128, min(hw, cap) + 1, 128):
        if hw % ts == 0:
            best = ts
    return best if best is not None else hw


def _streaming_forward(x3d, w2d, gamma2d, beta2d, out_dtype):
    n, cin, hw = x3d.shape
    cout = w2d.shape[0]
    ts = _pick_spatial_tile(hw)
    n_s = hw // ts

    # Pass 1: per-batch partial sum / sumsq of y = W x.
    psum, psq = pl.pallas_call(
        stats_kernel,
        out_shape=(jax.ShapeDtypeStruct((n, cout, 1), jnp.float32),
                   jax.ShapeDtypeStruct((n, cout, 1), jnp.float32)),
        grid=(n, n_s),
        in_specs=[pl.BlockSpec((1, cin, ts), lambda b, s: (b, 0, s)),
                  pl.BlockSpec((cout, cin), lambda b, s: (0, 0))],
        out_specs=(pl.BlockSpec((1, cout, 1), lambda b, s: (b, 0, 0)),
                   pl.BlockSpec((1, cout, 1), lambda b, s: (b, 0, 0))),
        compiler_params=pltpu.CompilerParams(
            dimension_semantics=("parallel", "arbitrary")),   # batch across cores,
    )(x3d, w2d)                                               # reduction axis last

    # Tiny per-channel finalize in plain JAX; fold BN into one scale/shift FMA.
    m = float(n * hw)
    mean = jnp.sum(psum, axis=0) / m                          # (Cout, 1)
    var = jnp.maximum(jnp.sum(psq, axis=0) / m - mean * mean, 0.0)
    scale = gamma2d * jax.lax.rsqrt(var + BN_EPS)
    shift = beta2d - mean * scale
    w_scaled = w2d * scale                                    # (Cout, Cin)

    # Pass 2: out = (scale*W) x + shift, lane-dense NCHW-native stores.
    return pl.pallas_call(
        norm_kernel,
        out_shape=jax.ShapeDtypeStruct((n, cout, hw), out_dtype),
        grid=(n, n_s),
        in_specs=[pl.BlockSpec((1, cin, ts), lambda b, s: (b, 0, s)),
                  pl.BlockSpec((cout, cin), lambda b, s: (0, 0)),
                  pl.BlockSpec((cout, 1), lambda b, s: (0, 0))],
        out_specs=pl.BlockSpec((1, cout, ts), lambda b, s: (b, 0, s)),
        compiler_params=pltpu.CompilerParams(
            dimension_semantics=("parallel", "parallel")),    # fully independent tiles
    )(x3d, w_scaled, shift)


# ---------------------------------------------------------------------------
# Public forward + reference
# ---------------------------------------------------------------------------
def skip_block_forward(x_nchw, conv_w, conv_b, bn_gamma, bn_beta,
                       force_streaming=False):
    """x_nchw: (N, Cin, H, W); conv_w: (Cout, Cin, 1, 1); conv_b: (Cout,).

    conv_b is accepted for API fidelity but unused: a per-channel bias applied
    before training-mode BatchNorm is exactly cancelled by the mean
    subtraction and does not affect the variance.
    """
    del conv_b
    n, cin, h, w = x_nchw.shape
    cout = conv_w.shape[0]
    hw = h * w
    out_dtype = x_nchw.dtype

    x3d = x_nchw.reshape(n, cin, hw)                      # free reshape, no transpose
    w2d = conv_w.reshape(cout, cin).astype(jnp.float32)
    gamma2d = bn_gamma.reshape(cout, 1).astype(jnp.float32)
    beta2d = bn_beta.reshape(cout, 1).astype(jnp.float32)

    x_bytes = n * cin * hw * x3d.dtype.itemsize
    yo_bytes = 2 * n * cout * hw * 4                      # f32 y-scratch + output
    fits = (x_bytes + yo_bytes) <= _FUSED_VMEM_BUDGET and n <= _FUSED_MAX_BATCH

    if fits and not force_streaming:
        out3d = _fused_forward(x3d, w2d, gamma2d, beta2d, out_dtype)
    else:
        out3d = _streaming_forward(x3d, w2d, gamma2d, beta2d, out_dtype)
    return out3d.reshape(n, cout, h, w)


def skip_block_reference(x_nchw, conv_w, conv_b, bn_gamma, bn_beta):
    """Pure-JAX reference of Conv2d(1x1) + BatchNorm2d (training-mode stats)."""
    n, cin, h, w = x_nchw.shape
    cout = conv_w.shape[0]
    x2d = jnp.transpose(x_nchw, (0, 2, 3, 1)).reshape(-1, cin)
    y = x2d @ conv_w.reshape(cout, cin).T + conv_b[None, :]
    mean = jnp.mean(y, axis=0, keepdims=True)
    var = jnp.mean((y - mean) ** 2, axis=0, keepdims=True)
    y = (y - mean) / jnp.sqrt(var + BN_EPS) * bn_gamma[None, :] + bn_beta[None, :]
    return jnp.transpose(y.reshape(n, h, w, cout), (0, 3, 1, 2))


if __name__ == "__main__":
    # Small shapes consistent with the module.
    N, C_IN, C_OUT, H, W = 2, 4, 8, 16, 16

    key = jax.random.PRNGKey(0)
    kx, kw, kb = jax.random.split(key, 3)

    x = jax.random.normal(kx, (N, C_IN, H, W), dtype=jnp.float32)

    # Deterministic parameter init (synthetic, not a checkpoint):
    # Conv2d(in_dim, out_dim, 1): weight (Cout, Cin, 1, 1), bias (Cout,)
    conv_w = jax.random.normal(kw, (C_OUT, C_IN, 1, 1), dtype=jnp.float32) * 0.1
    conv_b = jax.random.normal(kb, (C_OUT,), dtype=jnp.float32) * 0.1
    # BatchNorm2d(out_dim) init: weight=1, bias=0
    bn_gamma = jnp.ones((C_OUT,), dtype=jnp.float32)
    bn_beta = jnp.zeros((C_OUT,), dtype=jnp.float32)

    ref = skip_block_reference(x, conv_w, conv_b, bn_gamma, bn_beta)

    # Fused (VMEM-resident) path — the one the small shape selects.
    out_fused = jax.block_until_ready(
        skip_block_forward(x, conv_w, conv_b, bn_gamma, bn_beta))
    assert out_fused.shape == (N, C_OUT, H, W)
    assert jnp.allclose(out_fused, ref, atol=1e-4, rtol=1e-4)

    # Streaming two-pass path — exercised explicitly so both paths are covered.
    out_stream = jax.block_until_ready(
        skip_block_forward(x, conv_w, conv_b, bn_gamma, bn_beta,
                           force_streaming=True))
    assert out_stream.shape == (N, C_OUT, H, W)
    assert jnp.allclose(out_stream, ref, atol=1e-4, rtol=1e-4)

    print("KERNEL_OK")
</pallas_src>

<mosaic_0001>
module attributes {stable_mosaic.version = 11 : i64} {
  func.func @fused_kernel(%arg0: memref<2x4x256xf32, #tpu.memory_space<vmem>>, %arg1: memref<8x4xf32, #tpu.memory_space<vmem>>, %arg2: memref<8x1xf32, #tpu.memory_space<vmem>>, %arg3: memref<8x1xf32, #tpu.memory_space<vmem>>, %arg4: memref<2x8x256xf32, #tpu.memory_space<vmem>>, %arg5: memref<2x8x256xf32, #tpu.memory_space<vmem>>) attributes {dimension_semantics = [], scalar_prefetch = 0 : i64, scratch_operands = 1 : i64, tpu.core_type = #tpu.core_type<tc>} {
    %c0 = arith.constant 0 : index
    %c0_0 = arith.constant 0 : index
    %0 = vector.load %arg1[%c0, %c0_0] : memref<8x4xf32, #tpu.memory_space<vmem>>, vector<8x4xf32>
    %cst = arith.constant 0.000000e+00 : f32
    %1 = vector.broadcast %cst : f32 to vector<8x1xf32>
    %cst_1 = arith.constant 0.000000e+00 : f32
    %2 = vector.broadcast %cst_1 : f32 to vector<8x1xf32>
    %c0_2 = arith.constant 0 : index
    %c0_3 = arith.constant 0 : index
    %c0_4 = arith.constant 0 : index
    %3 = vector.load %arg0[%c0_2, %c0_3, %c0_4] : memref<2x4x256xf32, #tpu.memory_space<vmem>>, vector<1x4x256xf32>
    %4 = vector.shape_cast %3 : vector<1x4x256xf32> to vector<4x256xf32>
    %cst_5 = arith.constant dense<0.000000e+00> : vector<8x256xf32>
    %5 = tpu.matmul %0, %4, %cst_5 {dimension_numbers = #tpu.dot_dimension_numbers<[1], [0], [0], [1], [0, 0, 1, 1], [], []>} : vector<8x4xf32>, vector<4x256xf32>, vector<8x256xf32> -> vector<8x256xf32>
    %c0_6 = arith.constant 0 : index
    %c0_7 = arith.constant 0 : index
    %c0_8 = arith.constant 0 : index
    %6 = vector.load %arg5[%c0_6, %c0_7, %c0_8] : memref<2x8x256xf32, #tpu.memory_space<vmem>>, vector<1x8x256xf32>
    %7 = vector.shape_cast %6 : vector<1x8x256xf32> to vector<8x256xf32>
    %8 = vector.shape_cast %5 : vector<8x256xf32> to vector<1x8x256xf32>
    tpu.vector_store %arg5[%c0_6, %c0_7, %c0_8], %8 {strides = array<i32>} : memref<2x8x256xf32, #tpu.memory_space<vmem>>, vector<1x8x256xf32>,
    %cst_9 = arith.constant dense<0.000000e+00> : vector<8xf32>
    %9 = vector.multi_reduction <add>, %5, %cst_9 [1] : vector<8x256xf32> to vector<8xf32>
    %10 = vector.shape_cast %9 : vector<8xf32> to vector<8x1xf32>
    %11 = arith.addf %1, %10 : vector<8x1xf32>
    %12 = arith.mulf %5, %5 : vector<8x256xf32>
    %cst_10 = arith.constant dense<0.000000e+00> : vector<8xf32>
    %13 = vector.multi_reduction <add>, %12, %cst_10 [1] : vector<8x256xf32> to vector<8xf32>
    %14 = vector.shape_cast %13 : vector<8xf32> to vector<8x1xf32>
    %15 = arith.addf %2, %14 : vector<8x1xf32>
    %c1 = arith.constant 1 : index
    %c0_11 = arith.constant 0 : index
    %c0_12 = arith.constant 0 : index
    %16 = vector.load %arg0[%c1, %c0_11, %c0_12] : memref<2x4x256xf32, #tpu.memory_space<vmem>>, vector<1x4x256xf32>
    %17 = vector.shape_cast %16 : vector<1x4x256xf32> to vector<4x256xf32>
    %cst_13 = arith.constant dense<0.000000e+00> : vector<8x256xf32>
    %18 = tpu.matmul %0, %17, %cst_13 {dimension_numbers = #tpu.dot_dimension_numbers<[1], [0], [0], [1], [0, 0, 1, 1], [], []>} : vector<8x4xf32>, vector<4x256xf32>, vector<8x256xf32> -> vector<8x256xf32>
    %c1_14 = arith.constant 1 : index
    %c0_15 = arith.constant 0 : index
    %c0_16 = arith.constant 0 : index
    %19 = vector.load %arg5[%c1_14, %c0_15, %c0_16] : memref<2x8x256xf32, #tpu.memory_space<vmem>>, vector<1x8x256xf32>
    %20 = vector.shape_cast %19 : vector<1x8x256xf32> to vector<8x256xf32>
    %21 = vector.shape_cast %18 : vector<8x256xf32> to vector<1x8x256xf32>
    tpu.vector_store %arg5[%c1_14, %c0_15, %c0_16], %21 {strides = array<i32>} : memref<2x8x256xf32, #tpu.memory_space<vmem>>, vector<1x8x256xf32>,
    %cst_17 = arith.constant dense<0.000000e+00> : vector<8xf32>
    %22 = vector.multi_reduction <add>, %18, %cst_17 [1] : vector<8x256xf32> to vector<8xf32>
    %23 = vector.shape_cast %22 : vector<8xf32> to vector<8x1xf32>
    %24 = arith.addf %11, %23 : vector<8x1xf32>
    %25 = arith.mulf %18, %18 : vector<8x256xf32>
    %cst_18 = arith.constant dense<0.000000e+00> : vector<8xf32>
    %26 = vector.multi_reduction <add>, %25, %cst_18 [1] : vector<8x256xf32> to vector<8xf32>
    %27 = vector.shape_cast %26 : vector<8xf32> to vector<8x1xf32>
    %28 = arith.addf %15, %27 : vector<8x1xf32>
    %cst_19 = arith.constant 0.001953125 : f32
    %29 = vector.broadcast %cst_19 : f32 to vector<8x1xf32>
    %30 = arith.mulf %24, %29 : vector<8x1xf32>
    %cst_20 = arith.constant 0.001953125 : f32
    %31 = vector.broadcast %cst_20 : f32 to vector<8x1xf32>
    %32 = arith.mulf %28, %31 : vector<8x1xf32>
    %33 = arith.mulf %30, %30 : vector<8x1xf32>
    %34 = arith.subf %32, %33 : vector<8x1xf32>
    %cst_21 = arith.constant 0.000000e+00 : f32
    %35 = vector.broadcast %cst_21 : f32 to vector<8x1xf32>
    %36 = arith.maximumf %34, %35 : vector<8x1xf32>
    %c0_22 = arith.constant 0 : index
    %c0_23 = arith.constant 0 : index
    %37 = vector.load %arg2[%c0_22, %c0_23] : memref<8x1xf32, #tpu.memory_space<vmem>>, vector<8x1xf32>
    %cst_24 = arith.constant 9.99999974E-6 : f32
    %38 = vector.broadcast %cst_24 : f32 to vector<8x1xf32>
    %39 = arith.addf %36, %38 : vector<8x1xf32>
    %40 = math.rsqrt %39 : vector<8x1xf32>
    %41 = arith.mulf %37, %40 : vector<8x1xf32>
    %c0_25 = arith.constant 0 : index
    %c0_26 = arith.constant 0 : index
    %42 = vector.load %arg3[%c0_25, %c0_26] : memref<8x1xf32, #tpu.memory_space<vmem>>, vector<8x1xf32>
    %43 = arith.mulf %30, %41 : vector<8x1xf32>
    %44 = arith.subf %42, %43 : vector<8x1xf32>
    %c0_27 = arith.constant 0 : index
    %c0_28 = arith.constant 0 : index
    %c0_29 = arith.constant 0 : index
    %45 = vector.load %arg5[%c0_27, %c0_28, %c0_29] : memref<2x8x256xf32, #tpu.memory_space<vmem>>, vector<1x8x256xf32>
    %46 = vector.shape_cast %45 : vector<1x8x256xf32> to vector<8x256xf32>
    %47 = vector.broadcast %41 : vector<8x1xf32> to vector<8x256xf32>
    %48 = arith.mulf %46, %47 : vector<8x256xf32>
    %49 = vector.broadcast %44 : vector<8x1xf32> to vector<8x256xf32>
    %50 = arith.addf %48, %49 : vector<8x256xf32>
    %c0_30 = arith.constant 0 : index
    %c0_31 = arith.constant 0 : index
    %c0_32 = arith.constant 0 : index
    %51 = vector.load %arg4[%c0_30, %c0_31, %c0_32] : memref<2x8x256xf32, #tpu.memory_space<vmem>>, vector<1x8x256xf32>
    %52 = vector.shape_cast %51 : vector<1x8x256xf32> to vector<8x256xf32>
    %53 = vector.shape_cast %50 : vector<8x256xf32> to vector<1x8x256xf32>
    tpu.vector_store %arg4[%c0_30, %c0_31, %c0_32], %53 {strides = array<i32>} : memref<2x8x256xf32, #tpu.memory_space<vmem>>, vector<1x8x256xf32>,
    %c1_33 = arith.constant 1 : index
    %c0_34 = arith.constant 0 : index
    %c0_35 = arith.constant 0 : index
    %54 = vector.load %arg5[%c1_33, %c0_34, %c0_35] : memref<2x8x256xf32, #tpu.memory_space<vmem>>, vector<1x8x256xf32>
    %55 = vector.shape_cast %54 : vector<1x8x256xf32> to vector<8x256xf32>
    %56 = vector.broadcast %41 : vector<8x1xf32> to vector<8x256xf32>
    %57 = arith.mulf %55, %56 : vector<8x256xf32>
    %58 = vector.broadcast %44 : vector<8x1xf32> to vector<8x256xf32>
    %59 = arith.addf %57, %58 : vector<8x256xf32>
    %c1_36 = arith.constant 1 : index
    %c0_37 = arith.constant 0 : index
    %c0_38 = arith.constant 0 : index
    %60 = vector.load %arg4[%c1_36, %c0_37, %c0_38] : memref<2x8x256xf32, #tpu.memory_space<vmem>>, vector<1x8x256xf32>
    %61 = vector.shape_cast %60 : vector<1x8x256xf32> to vector<8x256xf32>
    %62 = vector.shape_cast %59 : vector<8x256xf32> to vector<1x8x256xf32>
    tpu.vector_store %arg4[%c1_36, %c0_37, %c0_38], %62 {strides = array<i32>} : memref<2x8x256xf32, #tpu.memory_space<vmem>>, vector<1x8x256xf32>,
    return
  }
}

</mosaic_0001>

<llo_original>
// kernel: tpu_custom_call.1
$region0: #{tpu_custom_call.1}
  #allocation0 [shape = 'u32[]', space=smem, size = 0x4, offset = 0x4, fixed_abs, tag = 'smem constant byte address 0x4 - core index']
  #allocation1 [shape = 'u32[144,128]{1,0:T(1,128)}', space=vmem, size = 0x12000, scoped, tag = 'internal scratch']
  #allocation2 [shape = 'f32[2,8,256]{2,1,0:T(8,128)}', space=vmem, size = 0x4000, scoped, tag = 'scratch operand']
  %s0 = inlined_call_operand.vmem [shape: f32[2,4,256], index: 0, kind: input, shape index: {}]
  %s1 = inlined_call_operand.vmem [shape: f32[8,4], index: 1, kind: input, shape index: {}]
  %s2 = inlined_call_operand.vmem [shape: f32[8,1], index: 2, kind: input, shape index: {}]
  %s3 = inlined_call_operand.vmem [shape: f32[8,1], index: 3, kind: input, shape index: {}]
  %s4 = inlined_call_operand.hbm [shape: f32[2,8,256], index: 4, kind: output, shape index: {}]
  %s5 = sld [smem:[#allocation0]]
  $region26: #{tpu_custom_call.1} parent=0
    _
  %s7 = ssub.s32 1, %s5
  %s8 = scalar_select 0, %s7, %s5
  $region1: #{tpu_custom_call.1} parent=0
    #allocation3 [shape = 'u8[16384]{0}', space=vmem, size = 0x4000, scoped, tag = 'output window, operand 0, single buffered']
    #allocation4 [shape = 's32[1]{0}', space=sflag, size = 0x4, scoped, tag = 'scoped memory for tpu_custom_call.1']
    %9 = vsyncpa [#allocation4], 0
    // Predicated region
    $region2: #{tpu_custom_call.1} parent=1 // pred_check
      _
    $region3: #{tpu_custom_call.1} parent=1 // pred_check_branch
      %11 = sbr.rel (0) target = $region5
    $region4: #{tpu_custom_call.1} parent=1 // pred_region
      _
    $region5: #{tpu_custom_call.1} parent=1 // pred_fallthru
      _
    // Predicated region
    $region6: #{tpu_custom_call.1} parent=1 // pred_check
      _
    $region7: #{tpu_custom_call.1} parent=1 // pred_check_branch
      %13 = sbr.rel (0) target = $region9
    $region8: #{tpu_custom_call.1} parent=1 // pred_region
      _
    $region9: #{tpu_custom_call.1} parent=1 // pred_fallthru
      _
    // Predicated region
    $region10: #{tpu_custom_call.1} parent=1 // pred_check
      _
    $region11: #{tpu_custom_call.1} parent=1 // pred_check_branch
      %15 = sbr.rel (0) target = $region13
    $region12: #{tpu_custom_call.1} parent=1 // pred_region
      _
    $region13: #{tpu_custom_call.1} parent=1 // pred_fallthru
      _
    // Predicated region
    $region14: #{tpu_custom_call.1} parent=1 // pred_check
      _
    $region15: #{tpu_custom_call.1} parent=1 // pred_check_branch
      %17 = sbr.rel (0) target = $region17
    $region16: #{tpu_custom_call.1} parent=1 // pred_region
      _
    $region17: #{tpu_custom_call.1} parent=1 // pred_fallthru
      _
    %v18 = vld [vmem:[%s1] sm:$0xff]
    %v19 = vld [vmem:[%s0] sm:$0xff]
    %v21 = vcombine.high %v19, %v19
    %vm22 = vcmask 31744
    %v24 = vsel %vm22, %v18, 0
    %vm26 = vcmask 1043456
    %v27 = vsel %vm26, %v19, 0
    %v29 = vsel %vm26, %v21, 0
    %31 = vmatprep.subr.mxu0 %v29
    %32 = vmatpush1.msra.mxu0 %v27
    %33 = vmatprep.subr.mxu0 0.0
    %34 = vmatpush1.msra.mxu0 0.0
    %35 = vmatprep.subr.mxu0 0.0
    %36 = vmatpush1.msra.mxu0 0.0
    %37 = vmatprep.subr.mxu0 0.0
    %38 = vmatpush1.msra.mxu0 0.0
    %39 = vmatprep.subr.mxu0 0.0
    %40 = vmatpush1.msra.mxu0 0.0
    %41 = vmatprep.subr.mxu0 0.0
    %42 = vmatpush1.msra.mxu0 0.0
    %43 = vmatprep.subr.mxu0 0.0
    %44 = vmatpush1.msra.mxu0 0.0
    %45 = vmatprep.subr.mxu0 0.0
    %46 = vmatpush1.msra.mxu0 0.0
    %47 = vmatprep.subr.mxu0 0.0
    %48 = vmatpush1.msra.mxu0 0.0
    %49 = vmatprep.subr.mxu0 0.0
    %50 = vmatpush1.msra.mxu0 0.0
    %51 = vmatprep.subr.mxu0 0.0
    %52 = vmatpush1.msra.mxu0 0.0
    %53 = vmatprep.subr.mxu0 0.0
    %54 = vmatpush1.msra.mxu0 0.0
    %55 = vmatprep.subr.mxu0 0.0
    %56 = vmatpush1.msra.mxu0 0.0
    %57 = vmatprep.subr.mxu0 0.0
    %58 = vmatpush1.msra.mxu0 0.0
    %59 = vmatprep.subr.mxu0 0.0
    %60 = vmatpush1.msra.mxu0 0.0
    %61 = vmatprep.subr.mxu0 0.0
    %62 = vmatpush1.msra.mxu0 0.0
    %63 = vmatprep.subr.mxu0 0.0
    %64 = vmatpush1.msra.mxu0 0.0
    %65 = vmatprep.subr.mxu0 0.0
    %66 = vmatpush1.msra.mxu0 0.0
    %67 = vmatprep.subr.mxu0 0.0
    %68 = vmatpush1.msra.mxu0 0.0
    %69 = vmatprep.subr.mxu0 0.0
    %70 = vmatpush1.msra.mxu0 0.0
    %71 = vmatprep.subr.mxu0 0.0
    %72 = vmatpush1.msra.mxu0 0.0
    %73 = vmatprep.subr.mxu0 0.0
    %74 = vmatpush1.msra.mxu0 0.0
    %75 = vmatprep.subr.mxu0 0.0
    %76 = vmatpush1.msra.mxu0 0.0
    %77 = vmatprep.subr.mxu0 0.0
    %78 = vmatpush1.msra.mxu0 0.0
    %79 = vmatprep.subr.mxu0 0.0
    %80 = vmatpush1.msra.mxu0 0.0
    %81 = vmatprep.subr.mxu0 0.0
    %82 = vmatpush1.msra.mxu0 0.0
    %83 = vmatprep.subr.mxu0 0.0
    %84 = vmatpush1.msra.mxu0 0.0
    %85 = vmatprep.subr.mxu0 0.0
    %86 = vmatpush1.msra.mxu0 0.0
    %87 = vmatprep.subr.mxu0 0.0
    %88 = vmatpush1.msra.mxu0 0.0
    %89 = vmatprep.subr.mxu0 0.0
    %90 = vmatpush1.msra.mxu0 0.0
    %91 = vmatprep.subr.mxu0 0.0
    %92 = vmatpush1.msra.mxu0 0.0
    %93 = vmatprep.subr.mxu0 0.0
    %94 = vmatpush1.msra.mxu0 0.0
    %95 = vmatprep.mubr.f32.mxu0 0.0
    %96 = vmatmul.mubr.f32.gmra.mrb[0].mxu0 %v24
    %v97 = vpop.f32.mrb[0].mxu0
    %v98 = vadd.f32 0.0, %v97
    %v99 = vpop.f32.mrb[0].mxu0
    %v100 = vadd.f32 0.0, %v99
    %101 = vdwg.mxu0
    %102 = vst [vmem:[#allocation2] sm:$0xff] %v98
    %103 = vst [vmem:[#allocation2 + $0x8] sm:$0xff] %v100
    %v104 = vadd.f32 %v98, %v100
    %105 = vadd.xlane.f32.xlu0 %v104
    %v106 = vpop.xlane.xlu0 %105
    %v107 = vadd.f32 %v106, 0.0
    %v108 = vmul.f32 %v98, %v98
    %v109 = vmul.f32 %v100, %v100
    %v110 = vadd.f32 %v108, %v109
    %111 = vadd.xlane.f32.xlu0 %v110
    %v112 = vpop.xlane.xlu0 %111
    %v113 = vadd.f32 %v112, 0.0
    %s114 = scalar_lea.vmem %s0, 8
    %v115 = vld [vmem:[%s114] sm:$0xff]
    %v117 = vcombine.high %v115, %v115
    %v118 = vsel %vm26, %v115, 0
    %v120 = vsel %vm26, %v117, 0
    %122 = vmatprep.subr.mxu0 %v120
    %123 = vmatpush1.msra.mxu0 %v118
    %124 = vmatprep.subr.mxu0 0.0
    %125 = vmatpush1.msra.mxu0 0.0
    %126 = vmatprep.subr.mxu0 0.0
    %127 = vmatpush1.msra.mxu0 0.0
    %128 = vmatprep.subr.mxu0 0.0
    %129 = vmatpush1.msra.mxu0 0.0
    %130 = vmatprep.subr.mxu0 0.0
    %131 = vmatpush1.msra.mxu0 0.0
    %132 = vmatprep.subr.mxu0 0.0
    %133 = vmatpush1.msra.mxu0 0.0
    %134 = vmatprep.subr.mxu0 0.0
    %135 = vmatpush1.msra.mxu0 0.0
    %136 = vmatprep.subr.mxu0 0.0
    %137 = vmatpush1.msra.mxu0 0.0
    %138 = vmatprep.subr.mxu0 0.0
    %139 = vmatpush1.msra.mxu0 0.0
    %140 = vmatprep.subr.mxu0 0.0
    %141 = vmatpush1.msra.mxu0 0.0
    %142 = vmatprep.subr.mxu0 0.0
    %143 = vmatpush1.msra.mxu0 0.0
    %144 = vmatprep.subr.mxu0 0.0
    %145 = vmatpush1.msra.mxu0 0.0
    %146 = vmatprep.subr.mxu0 0.0
    %147 = vmatpush1.msra.mxu0 0.0
    %148 = vmatprep.subr.mxu0 0.0
    %149 = vmatpush1.msra.mxu0 0.0
    %150 = vmatprep.subr.mxu0 0.0
    %151 = vmatpush1.msra.mxu0 0.0
    %152 = vmatprep.subr.mxu0 0.0
    %153 = vmatpush1.msra.mxu0 0.0
    %154 = vmatprep.subr.mxu0 0.0
    %155 = vmatpush1.msra.mxu0 0.0
    %156 = vmatprep.subr.mxu0 0.0
    %157 = vmatpush1.msra.mxu0 0.0
    %158 = vmatprep.subr.mxu0 0.0
    %159 = vmatpush1.msra.mxu0 0.0
    %160 = vmatprep.subr.mxu0 0.0
    %161 = vmatpush1.msra.mxu0 0.0
    %162 = vmatprep.subr.mxu0 0.0
    %163 = vmatpush1.msra.mxu0 0.0
    %164 = vmatprep.subr.mxu0 0.0
    %165 = vmatpush1.msra.mxu0 0.0
    %166 = vmatprep.subr.mxu0 0.0
    %167 = vmatpush1.msra.mxu0 0.0
    %168 = vmatprep.subr.mxu0 0.0
    %169 = vmatpush1.msra.mxu0 0.0
    %170 = vmatprep.subr.mxu0 0.0
    %171 = vmatpush1.msra.mxu0 0.0
    %172 = vmatprep.subr.mxu0 0.0
    %173 = vmatpush1.msra.mxu0 0.0
    %174 = vmatprep.subr.mxu0 0.0
    %175 = vmatpush1.msra.mxu0 0.0
    %176 = vmatprep.subr.mxu0 0.0
    %177 = vmatpush1.msra.mxu0 0.0
    %178 = vmatprep.subr.mxu0 0.0
    %179 = vmatpush1.msra.mxu0 0.0
    %180 = vmatprep.subr.mxu0 0.0
    %181 = vmatpush1.msra.mxu0 0.0
    %182 = vmatprep.subr.mxu0 0.0
    %183 = vmatpush1.msra.mxu0 0.0
    %184 = vmatprep.subr.mxu0 0.0
    %185 = vmatpush1.msra.mxu0 0.0
    %186 = vmatprep.mubr.f32.mxu0 0.0
    %187 = vmatmul.mubr.f32.gmra.mrb[0].mxu0 %v24
    %v188 = vpop.f32.mrb[0].mxu0
    %v189 = vadd.f32 0.0, %v188
    %v190 = vpop.f32.mrb[0].mxu0
    %v191 = vadd.f32 0.0, %v190
    %192 = vdwg.mxu0
    %s193 = scalar_lea.vmem [#allocation2], 16
    %194 = vst [vmem:[%s193] sm:$0xff] %v189
    %195 = vst [vmem:[%s193 + $0x8] sm:$0xff] %v191
    %v196 = vadd.f32 %v189, %v191
    %197 = vadd.xlane.f32.xlu0 %v196
    %v198 = vpop.xlane.xlu0 %197
    %v199 = vadd.f32 %v107, %v198
    %v200 = vmul.f32 %v189, %v189
    %v201 = vmul.f32 %v191, %v191
    %v202 = vadd.f32 %v200, %v201
    %203 = vadd.xlane.f32.xlu0 %v202
    %v204 = vpop.xlane.xlu0 %203
    %v205 = vadd.f32 %v113, %v204
    %v206 = vmul.f32 %v199, 0.001953125
    %v207 = vmul.f32 %v205, 0.001953125
    %v208 = vmul.f32 %v206, %v206
    %v209 = vsub.f32 %v207, %v208
    %v210 = vmax.f32 %v209, 0.0
    %v211 = vld [vmem:[%s2] sm:$0xff]
    %v212 = vadd.f32 %v210, 1e-05
    %v213 = vrsqrt.pop %v212
    %v214 = vmul.f32 %v211, %v213
    %v215 = vld [vmem:[%s3] sm:$0xff]
    %v216 = vmul.f32 %v206, %v214
    %v217 = vsub.f32 %v215, %v216
    %v218 = vld [vmem:[#allocation2] sm:$0xff]
    %v219 = vld [vmem:[#allocation2 + $0x8] sm:$0xff]
    %221 = vset.pattern.permute.xlu0 0
    %222 = vperm.xlu0 %221, %v214
    %v223 = vpop.permute.xlu0 %222
    %v225 = vmul.f32 %v218, %v223
    %v226 = vmul.f32 %v219, %v223
    %228 = vset.pattern.permute.xlu0 0
    %229 = vperm.xlu0 %228, %v217
    %v230 = vpop.permute.xlu0 %229
    %v232 = vadd.f32 %v225, %v230
    %v233 = vadd.f32 %v226, %v230
    %234 = vst [vmem:[#allocation3] sm:$0xff] %v232
    %235 = vst [vmem:[#allocation3 + $0x8] sm:$0xff] %v233
    %v236 = vld [vmem:[%s193] sm:$0xff]
    %v237 = vld [vmem:[%s193 + $0x8] sm:$0xff]
    %v238 = vmul.f32 %v236, %v223
    %v239 = vmul.f32 %v237, %v223
    %v240 = vadd.f32 %v238, %v230
    %v241 = vadd.f32 %v239, %v230
    %s242 = scalar_lea.vmem [#allocation3], 16
    %243 = vst [vmem:[%s242] sm:$0xff] %v240
    %244 = vst [vmem:[%s242 + $0x8] sm:$0xff] %v241
    // Predicated region
    $region18: #{tpu_custom_call.1} parent=1 // pred_check
      _
    $region19: #{tpu_custom_call.1} parent=1 // pred_check_branch
      %246 = sbr.rel (0) target = $region21
    $region20: #{tpu_custom_call.1} parent=1 // pred_region
      %s248 = ssub.s32 512, 512
      %249 = vsyncadd [#allocation4], %s248
      %s250 = sshll.u32 [#allocation3], 4
      %s251 = int_to_ptr.vmem [resolvable:$true] %s250
      %256 = dma.vmem_to_hbm [thread:$0]  %s251, 512, %s4, [#allocation4], 256, 256, 16
    $region21: #{tpu_custom_call.1} parent=1 // pred_fallthru
      _
    // Predicated region
    $region22: #{tpu_custom_call.1} parent=1 // pred_check
      _
    $region23: #{tpu_custom_call.1} parent=1 // pred_check_branch
      %258 = sbr.rel (0) target = $region25
    $region24: #{tpu_custom_call.1} parent=1 // pred_region
      %259 = dma.done [#allocation4], 512
    $region25: #{tpu_custom_call.1} parent=1 // pred_fallthru
      _
    %260 = vsyncpa [#allocation4], 1

</llo_original>
